<compile_context>
chip_gen: v7x
topology: tpu7x:2x2x1
jax: 0.10.0
libtpu: 0.0.40
codegen_flags: <defaults>
</compile_context>

<pallas_src>
import functools

import jax
import jax.numpy as jnp
from jax import lax
from jax.experimental import pallas as pl
from jax.experimental.pallas import tpu as pltpu

EPS = 1e-5  # torch.nn.InstanceNorm2d default


def _residual_block_kernel(x_ref, w1_ref, b1_ref, w2_ref, b2_ref, o_ref,
                           *, BB, C, H, W):
    HW = H * W
    x = x_ref[...].astype(jnp.float32)      # (BB, C, HW): HW on the lane axis
    w1 = w1_ref[...]                        # (C, 9C)
    w2 = w2_ref[...]
    b1 = b1_ref[...]                        # (C, 1)
    b2 = b2_ref[...]

    # Lane-index masks for the reflection fixups (built once, shared by both convs).
    s_idx = lax.broadcasted_iota(jnp.int32, (BB, C, HW), 2)
    if (W & (W - 1)) == 0:                  # power-of-two W: cheap bitwise column id
        w_idx = jnp.bitwise_and(s_idx, W - 1)
    else:
        w_idx = jnp.remainder(s_idx, W)
    is_w_first = w_idx == 0
    is_w_last = w_idx == (W - 1)
    is_h_first = s_idx < W
    is_h_last = s_idx >= (HW - W)

    def conv3x3_reflect(a, w_r, bias):
        """3x3 conv with reflect-pad(1). a: (BB, C, HW); w_r: (C, 9C); bias: (C, 1)."""
        # W-direction taps: shift along lanes, reflect at each image-row edge.
        a_p = jnp.roll(a, -1, axis=2)       # a[..., s + 1]
        a_m = jnp.roll(a, 1, axis=2)        # a[..., s - 1]
        w_taps = (
            jnp.where(is_w_first, a_p, a_m),   # dw = -1  (kw = 0)
            a,                                  # dw =  0  (kw = 1)
            jnp.where(is_w_last, a_m, a_p),    # dw = +1  (kw = 2)
        )
        # H-direction taps on each W-tap: shift by +-W lanes, reflect top/bottom.
        taps = [[None] * 3 for _ in range(3)]  # taps[kh][kw]
        for kw, t in enumerate(w_taps):
            t_dn = jnp.roll(t, -W, axis=2)     # t[..., s + W]
            t_up = jnp.roll(t, W, axis=2)      # t[..., s - W]
            taps[0][kw] = jnp.where(is_h_first, t_dn, t_up)   # dh = -1 (kh = 0)
            taps[1][kw] = t                                    # dh =  0 (kh = 1)
            taps[2][kw] = jnp.where(is_h_last, t_up, t_dn)    # dh = +1 (kh = 2)
        # im2col: (BB, 9C, HW) patch matrix; rows ordered (kh, kw, ci) to match w_r.
        patches = jnp.concatenate(
            [taps[kh][kw] for kh in range(3) for kw in range(3)], axis=1)
        # One fused MXU matmul per sample: (C, 9C) @ (9C, HW) -> (C, HW).
        outs = [
            jnp.dot(w_r, patches[b], preferred_element_type=jnp.float32) + bias
            for b in range(BB)
        ]
        return jnp.stack(outs, axis=0)          # (BB, C, HW) f32

    inv_hw = jnp.float32(1.0 / HW)

    def instance_norm(y):
        """Per-(sample, channel) normalization over HW; single-pass sum & sumsq."""
        s1 = jnp.sum(y, axis=2, keepdims=True)
        s2 = jnp.sum(y * y, axis=2, keepdims=True)
        mu = s1 * inv_hw
        var = jnp.maximum(s2 * inv_hw - mu * mu, 0.0)   # biased var, like PyTorch
        return (y - mu) * lax.rsqrt(var + EPS)

    h = jnp.maximum(instance_norm(conv3x3_reflect(x, w1, b1)), 0.0)   # conv1+IN+ReLU
    h = instance_norm(conv3x3_reflect(h, w2, b2))                     # conv2+IN
    o_ref[...] = (x + h).astype(o_ref.dtype)    # residual; full-128-lane stores


def residual_block_2d(x, w1, b1, w2, b2):
    """x: (B, C, H, W) f32 (NCHW, like PyTorch); w*: (3, 3, C, C) HWIO; b*: (C,)."""
    B, C, H, W = x.shape
    HW = H * W

    # Lane-dense presentation: channel-major (B, C, H*W), H*W on the lane axis.
    x_flat = x.reshape(B, C, HW)
    # Weights flattened for the fused im2col matmul: (C_out, 9*C_in) with column
    # index (kh*3 + kw)*C_in + ci — matches the kernel's patch ordering.
    w1_r = w1.reshape(9 * C, C).T
    w2_r = w2.reshape(9 * C, C).T
    b1_r = b1.reshape(C, 1)
    b2_r = b2.reshape(C, 1)

    # min(B, 2) parallel grid steps: amortizes per-step overhead while keeping
    # both v7x TensorCores busy (on v5e/v6e a single step would also be fine).
    num_steps = 2 if (B >= 2 and B % 2 == 0) else 1
    BB = B // num_steps

    kernel = functools.partial(_residual_block_kernel, BB=BB, C=C, H=H, W=W)
    out = pl.pallas_call(
        kernel,
        out_shape=jax.ShapeDtypeStruct((B, C, HW), x.dtype),
        grid_spec=pltpu.PrefetchScalarGridSpec(
            num_scalar_prefetch=0,
            grid=(num_steps,),
            in_specs=[
                pl.BlockSpec((BB, C, HW), lambda i: (i, 0, 0)),
                pl.BlockSpec((C, 9 * C), lambda i: (0, 0)),
                pl.BlockSpec((C, 1), lambda i: (0, 0)),
                pl.BlockSpec((C, 9 * C), lambda i: (0, 0)),
                pl.BlockSpec((C, 1), lambda i: (0, 0)),
            ],
            out_specs=pl.BlockSpec((BB, C, HW), lambda i: (i, 0, 0)),
        ),
        compiler_params=pltpu.CompilerParams(
            dimension_semantics=("parallel",),
            vmem_limit_bytes=32 * 1024 * 1024,   # v7x-safe; footprint here is tiny
        ),
    )(x_flat, w1_r, b1_r, w2_r, b2_r)
    return out.reshape(B, C, H, W)


def _reference(x, w1, b1, w2, b2):
    """Pure-JAX NCHW reference for numerical sanity."""
    def conv(z, w, b):
        zp = jnp.pad(z, ((0, 0), (0, 0), (1, 1), (1, 1)), mode="reflect")
        y = lax.conv_general_dilated(
            zp, w, (1, 1), "VALID",
            dimension_numbers=("NCHW", "HWIO", "NCHW"),
            precision=lax.Precision.HIGHEST)
        return y + b.reshape(1, -1, 1, 1)

    def inorm(y):
        mu = jnp.mean(y, axis=(2, 3), keepdims=True)
        var = jnp.mean((y - mu) ** 2, axis=(2, 3), keepdims=True)
        return (y - mu) / jnp.sqrt(var + EPS)

    h = jax.nn.relu(inorm(conv(x, w1, b1)))
    return x + inorm(conv(h, w2, b2))


if __name__ == "__main__":
    B, C, H, W = 2, 4, 16, 16   # ResidualBlock2d(features=4) at 16x16 spatial

    key = jax.random.PRNGKey(0)
    kx, kw1, kb1, kw2, kb2 = jax.random.split(key, 5)

    x = jax.random.normal(kx, (B, C, H, W), dtype=jnp.float32)
    # Conv2d(features, features, 3) synthetic weights, HWIO layout; (C,) biases.
    w1 = jax.random.normal(kw1, (3, 3, C, C), dtype=jnp.float32) * 0.1
    b1 = jax.random.normal(kb1, (C,), dtype=jnp.float32) * 0.1
    w2 = jax.random.normal(kw2, (3, 3, C, C), dtype=jnp.float32) * 0.1
    b2 = jax.random.normal(kb2, (C,), dtype=jnp.float32) * 0.1

    out = jax.block_until_ready(residual_block_2d(x, w1, b1, w2, b2))
    ref = jax.block_until_ready(_reference(x, w1, b1, w2, b2))

    assert out.shape == (B, C, H, W)
    max_err = float(jnp.max(jnp.abs(out - ref)))
    assert jnp.allclose(out, ref, rtol=1e-3, atol=1e-3), max_err

    print("KERNEL_OK")
</pallas_src>

<mosaic_0001>
module attributes {stable_mosaic.version = 11 : i64} {
  func.func @_residual_block_kernel(%arg0: i32, %arg1: memref<1x4x256xf32, #tpu.memory_space<vmem>>, %arg2: memref<4x36xf32, #tpu.memory_space<vmem>>, %arg3: memref<4x1xf32, #tpu.memory_space<vmem>>, %arg4: memref<4x36xf32, #tpu.memory_space<vmem>>, %arg5: memref<4x1xf32, #tpu.memory_space<vmem>>, %arg6: memref<1x4x256xf32, #tpu.memory_space<vmem>>) attributes {dimension_semantics = [#tpu.dimension_semantics<parallel>], iteration_bounds = array<i64: 2>, scalar_prefetch = 0 : i64, scratch_operands = 0 : i64, tpu.core_type = #tpu.core_type<tc>, window_params = [{transform_indices = @transform_0, window_bounds = array<i64: 1, 4, 256>}, {pipeline_mode = #tpu.pipeline_mode<synchronous>, transform_indices = @transform_1, window_bounds = array<i64: 4, 36>}, {pipeline_mode = #tpu.pipeline_mode<synchronous>, transform_indices = @transform_2, window_bounds = array<i64: 4, 1>}, {pipeline_mode = #tpu.pipeline_mode<synchronous>, transform_indices = @transform_3, window_bounds = array<i64: 4, 36>}, {pipeline_mode = #tpu.pipeline_mode<synchronous>, transform_indices = @transform_4, window_bounds = array<i64: 4, 1>}, {transform_indices = @transform_5, window_bounds = array<i64: 1, 4, 256>}]} {
    %c0 = arith.constant 0 : index
    %c0_0 = arith.constant 0 : index
    %c0_1 = arith.constant 0 : index
    %0 = vector.load %arg1[%c0, %c0_0, %c0_1] : memref<1x4x256xf32, #tpu.memory_space<vmem>>, vector<1x4x256xf32>
    %c0_2 = arith.constant 0 : index
    %c0_3 = arith.constant 0 : index
    %1 = vector.load %arg2[%c0_2, %c0_3] : memref<4x36xf32, #tpu.memory_space<vmem>>, vector<4x36xf32>
    %c0_4 = arith.constant 0 : index
    %c0_5 = arith.constant 0 : index
    %2 = vector.load %arg4[%c0_4, %c0_5] : memref<4x36xf32, #tpu.memory_space<vmem>>, vector<4x36xf32>
    %c0_6 = arith.constant 0 : index
    %c0_7 = arith.constant 0 : index
    %3 = vector.load %arg3[%c0_6, %c0_7] : memref<4x1xf32, #tpu.memory_space<vmem>>, vector<4x1xf32>
    %c0_8 = arith.constant 0 : index
    %c0_9 = arith.constant 0 : index
    %4 = vector.load %arg5[%c0_8, %c0_9] : memref<4x1xf32, #tpu.memory_space<vmem>>, vector<4x1xf32>
    %5 = tpu.iota {dimensions = array<i32: 2>} : vector<1x4x256xi32>
    %c15_i32 = arith.constant 15 : i32
    %6 = vector.broadcast %c15_i32 : i32 to vector<1x4x256xi32>
    %7 = arith.andi %5, %6 : vector<1x4x256xi32>
    %c0_i32 = arith.constant 0 : i32
    %8 = vector.broadcast %c0_i32 : i32 to vector<1x4x256xi32>
    %9 = arith.cmpi eq, %7, %8 : vector<1x4x256xi32>
    %c15_i32_10 = arith.constant 15 : i32
    %10 = vector.broadcast %c15_i32_10 : i32 to vector<1x4x256xi32>
    %11 = arith.cmpi eq, %7, %10 : vector<1x4x256xi32>
    %c16_i32 = arith.constant 16 : i32
    %12 = vector.broadcast %c16_i32 : i32 to vector<1x4x256xi32>
    %13 = arith.cmpi slt, %5, %12 : vector<1x4x256xi32>
    %c240_i32 = arith.constant 240 : i32
    %14 = vector.broadcast %c240_i32 : i32 to vector<1x4x256xi32>
    %15 = arith.cmpi sge, %5, %14 : vector<1x4x256xi32>
    %16 = vector.extract_strided_slice %0 {offsets = [0, 0, 1], sizes = [1, 4, 255], strides = [1, 1, 1]} : vector<1x4x256xf32> to vector<1x4x255xf32>
    %17 = vector.extract_strided_slice %0 {offsets = [0, 0, 0], sizes = [1, 4, 1], strides = [1, 1, 1]} : vector<1x4x256xf32> to vector<1x4x1xf32>
    %18 = tpu.concatenate %16, %17 in 2 : vector<1x4x255xf32>, vector<1x4x1xf32> -> vector<1x4x256xf32>
    %19 = vector.extract_strided_slice %0 {offsets = [0, 0, 255], sizes = [1, 4, 1], strides = [1, 1, 1]} : vector<1x4x256xf32> to vector<1x4x1xf32>
    %20 = vector.extract_strided_slice %0 {offsets = [0, 0, 0], sizes = [1, 4, 255], strides = [1, 1, 1]} : vector<1x4x256xf32> to vector<1x4x255xf32>
    %21 = tpu.concatenate %19, %20 in 2 : vector<1x4x1xf32>, vector<1x4x255xf32> -> vector<1x4x256xf32>
    %22 = arith.select %9, %18, %21 : vector<1x4x256xi1>, vector<1x4x256xf32>
    %23 = arith.select %11, %21, %18 : vector<1x4x256xi1>, vector<1x4x256xf32>
    %24 = vector.extract_strided_slice %22 {offsets = [0, 0, 16], sizes = [1, 4, 240], strides = [1, 1, 1]} : vector<1x4x256xf32> to vector<1x4x240xf32>
    %25 = vector.extract_strided_slice %22 {offsets = [0, 0, 0], sizes = [1, 4, 16], strides = [1, 1, 1]} : vector<1x4x256xf32> to vector<1x4x16xf32>
    %26 = tpu.concatenate %24, %25 in 2 : vector<1x4x240xf32>, vector<1x4x16xf32> -> vector<1x4x256xf32>
    %27 = vector.extract_strided_slice %22 {offsets = [0, 0, 240], sizes = [1, 4, 16], strides = [1, 1, 1]} : vector<1x4x256xf32> to vector<1x4x16xf32>
    %28 = vector.extract_strided_slice %22 {offsets = [0, 0, 0], sizes = [1, 4, 240], strides = [1, 1, 1]} : vector<1x4x256xf32> to vector<1x4x240xf32>
    %29 = tpu.concatenate %27, %28 in 2 : vector<1x4x16xf32>, vector<1x4x240xf32> -> vector<1x4x256xf32>
    %30 = arith.select %13, %26, %29 : vector<1x4x256xi1>, vector<1x4x256xf32>
    %31 = arith.select %15, %29, %26 : vector<1x4x256xi1>, vector<1x4x256xf32>
    %32 = vector.extract_strided_slice %0 {offsets = [0, 0, 16], sizes = [1, 4, 240], strides = [1, 1, 1]} : vector<1x4x256xf32> to vector<1x4x240xf32>
    %33 = vector.extract_strided_slice %0 {offsets = [0, 0, 0], sizes = [1, 4, 16], strides = [1, 1, 1]} : vector<1x4x256xf32> to vector<1x4x16xf32>
    %34 = tpu.concatenate %32, %33 in 2 : vector<1x4x240xf32>, vector<1x4x16xf32> -> vector<1x4x256xf32>
    %35 = vector.extract_strided_slice %0 {offsets = [0, 0, 240], sizes = [1, 4, 16], strides = [1, 1, 1]} : vector<1x4x256xf32> to vector<1x4x16xf32>
    %36 = vector.extract_strided_slice %0 {offsets = [0, 0, 0], sizes = [1, 4, 240], strides = [1, 1, 1]} : vector<1x4x256xf32> to vector<1x4x240xf32>
    %37 = tpu.concatenate %35, %36 in 2 : vector<1x4x16xf32>, vector<1x4x240xf32> -> vector<1x4x256xf32>
    %38 = arith.select %13, %34, %37 : vector<1x4x256xi1>, vector<1x4x256xf32>
    %39 = arith.select %15, %37, %34 : vector<1x4x256xi1>, vector<1x4x256xf32>
    %40 = vector.extract_strided_slice %23 {offsets = [0, 0, 16], sizes = [1, 4, 240], strides = [1, 1, 1]} : vector<1x4x256xf32> to vector<1x4x240xf32>
    %41 = vector.extract_strided_slice %23 {offsets = [0, 0, 0], sizes = [1, 4, 16], strides = [1, 1, 1]} : vector<1x4x256xf32> to vector<1x4x16xf32>
    %42 = tpu.concatenate %40, %41 in 2 : vector<1x4x240xf32>, vector<1x4x16xf32> -> vector<1x4x256xf32>
    %43 = vector.extract_strided_slice %23 {offsets = [0, 0, 240], sizes = [1, 4, 16], strides = [1, 1, 1]} : vector<1x4x256xf32> to vector<1x4x16xf32>
    %44 = vector.extract_strided_slice %23 {offsets = [0, 0, 0], sizes = [1, 4, 240], strides = [1, 1, 1]} : vector<1x4x256xf32> to vector<1x4x240xf32>
    %45 = tpu.concatenate %43, %44 in 2 : vector<1x4x16xf32>, vector<1x4x240xf32> -> vector<1x4x256xf32>
    %46 = arith.select %13, %42, %45 : vector<1x4x256xi1>, vector<1x4x256xf32>
    %47 = arith.select %15, %45, %42 : vector<1x4x256xi1>, vector<1x4x256xf32>
    %48 = tpu.concatenate %30, %38, %46, %22, %0, %23, %31, %39, %47 in 1 : vector<1x4x256xf32>, vector<1x4x256xf32>, vector<1x4x256xf32>, vector<1x4x256xf32>, vector<1x4x256xf32>, vector<1x4x256xf32>, vector<1x4x256xf32>, vector<1x4x256xf32>, vector<1x4x256xf32> -> vector<1x36x256xf32>
    %49 = vector.shape_cast %48 : vector<1x36x256xf32> to vector<36x256xf32>
    %cst = arith.constant dense<0.000000e+00> : vector<4x256xf32>
    %50 = tpu.matmul %1, %49, %cst {dimension_numbers = #tpu.dot_dimension_numbers<[1], [0], [0], [1], [0, 0, 1, 1], [], []>} : vector<4x36xf32>, vector<36x256xf32>, vector<4x256xf32> -> vector<4x256xf32>
    %51 = vector.broadcast %3 : vector<4x1xf32> to vector<4x256xf32>
    %52 = arith.addf %50, %51 : vector<4x256xf32>
    %53 = vector.shape_cast %52 : vector<4x256xf32> to vector<1x4x256xf32>
    %cst_11 = arith.constant dense<0.000000e+00> : vector<1x4xf32>
    %54 = vector.multi_reduction <add>, %53, %cst_11 [2] : vector<1x4x256xf32> to vector<1x4xf32>
    %55 = vector.shape_cast %54 : vector<1x4xf32> to vector<1x4x1xf32>
    %56 = arith.mulf %53, %53 : vector<1x4x256xf32>
    %cst_12 = arith.constant dense<0.000000e+00> : vector<1x4xf32>
    %57 = vector.multi_reduction <add>, %56, %cst_12 [2] : vector<1x4x256xf32> to vector<1x4xf32>
    %58 = vector.shape_cast %57 : vector<1x4xf32> to vector<1x4x1xf32>
    %cst_13 = arith.constant 3.906250e-03 : f32
    %59 = vector.broadcast %cst_13 : f32 to vector<1x4x1xf32>
    %60 = arith.mulf %55, %59 : vector<1x4x1xf32>
    %cst_14 = arith.constant 3.906250e-03 : f32
    %61 = vector.broadcast %cst_14 : f32 to vector<1x4x1xf32>
    %62 = arith.mulf %58, %61 : vector<1x4x1xf32>
    %63 = arith.mulf %60, %60 : vector<1x4x1xf32>
    %64 = arith.subf %62, %63 : vector<1x4x1xf32>
    %cst_15 = arith.constant 0.000000e+00 : f32
    %65 = vector.broadcast %cst_15 : f32 to vector<1x4x1xf32>
    %66 = arith.maximumf %64, %65 : vector<1x4x1xf32>
    %67 = vector.broadcast %60 : vector<1x4x1xf32> to vector<1x4x256xf32>
    %68 = arith.subf %53, %67 : vector<1x4x256xf32>
    %cst_16 = arith.constant 9.99999974E-6 : f32
    %69 = vector.broadcast %cst_16 : f32 to vector<1x4x1xf32>
    %70 = arith.addf %66, %69 : vector<1x4x1xf32>
    %71 = math.rsqrt %70 : vector<1x4x1xf32>
    %72 = vector.broadcast %71 : vector<1x4x1xf32> to vector<1x4x256xf32>
    %73 = arith.mulf %68, %72 : vector<1x4x256xf32>
    %cst_17 = arith.constant 0.000000e+00 : f32
    %74 = vector.broadcast %cst_17 : f32 to vector<1x4x256xf32>
    %75 = arith.maximumf %73, %74 : vector<1x4x256xf32>
    %76 = vector.extract_strided_slice %75 {offsets = [0, 0, 1], sizes = [1, 4, 255], strides = [1, 1, 1]} : vector<1x4x256xf32> to vector<1x4x255xf32>
    %77 = vector.extract_strided_slice %75 {offsets = [0, 0, 0], sizes = [1, 4, 1], strides = [1, 1, 1]} : vector<1x4x256xf32> to vector<1x4x1xf32>
    %78 = tpu.concatenate %76, %77 in 2 : vector<1x4x255xf32>, vector<1x4x1xf32> -> vector<1x4x256xf32>
    %79 = vector.extract_strided_slice %75 {offsets = [0, 0, 255], sizes = [1, 4, 1], strides = [1, 1, 1]} : vector<1x4x256xf32> to vector<1x4x1xf32>
    %80 = vector.extract_strided_slice %75 {offsets = [0, 0, 0], sizes = [1, 4, 255], strides = [1, 1, 1]} : vector<1x4x256xf32> to vector<1x4x255xf32>
    %81 = tpu.concatenate %79, %80 in 2 : vector<1x4x1xf32>, vector<1x4x255xf32> -> vector<1x4x256xf32>
    %82 = arith.select %9, %78, %81 : vector<1x4x256xi1>, vector<1x4x256xf32>
    %83 = arith.select %11, %81, %78 : vector<1x4x256xi1>, vector<1x4x256xf32>
    %84 = vector.extract_strided_slice %82 {offsets = [0, 0, 16], sizes = [1, 4, 240], strides = [1, 1, 1]} : vector<1x4x256xf32> to vector<1x4x240xf32>
    %85 = vector.extract_strided_slice %82 {offsets = [0, 0, 0], sizes = [1, 4, 16], strides = [1, 1, 1]} : vector<1x4x256xf32> to vector<1x4x16xf32>
    %86 = tpu.concatenate %84, %85 in 2 : vector<1x4x240xf32>, vector<1x4x16xf32> -> vector<1x4x256xf32>
    %87 = vector.extract_strided_slice %82 {offsets = [0, 0, 240], sizes = [1, 4, 16], strides = [1, 1, 1]} : vector<1x4x256xf32> to vector<1x4x16xf32>
    %88 = vector.extract_strided_slice %82 {offsets = [0, 0, 0], sizes = [1, 4, 240], strides = [1, 1, 1]} : vector<1x4x256xf32> to vector<1x4x240xf32>
    %89 = tpu.concatenate %87, %88 in 2 : vector<1x4x16xf32>, vector<1x4x240xf32> -> vector<1x4x256xf32>
    %90 = arith.select %13, %86, %89 : vector<1x4x256xi1>, vector<1x4x256xf32>
    %91 = arith.select %15, %89, %86 : vector<1x4x256xi1>, vector<1x4x256xf32>
    %92 = vector.extract_strided_slice %75 {offsets = [0, 0, 16], sizes = [1, 4, 240], strides = [1, 1, 1]} : vector<1x4x256xf32> to vector<1x4x240xf32>
    %93 = vector.extract_strided_slice %75 {offsets = [0, 0, 0], sizes = [1, 4, 16], strides = [1, 1, 1]} : vector<1x4x256xf32> to vector<1x4x16xf32>
    %94 = tpu.concatenate %92, %93 in 2 : vector<1x4x240xf32>, vector<1x4x16xf32> -> vector<1x4x256xf32>
    %95 = vector.extract_strided_slice %75 {offsets = [0, 0, 240], sizes = [1, 4, 16], strides = [1, 1, 1]} : vector<1x4x256xf32> to vector<1x4x16xf32>
    %96 = vector.extract_strided_slice %75 {offsets = [0, 0, 0], sizes = [1, 4, 240], strides = [1, 1, 1]} : vector<1x4x256xf32> to vector<1x4x240xf32>
    %97 = tpu.concatenate %95, %96 in 2 : vector<1x4x16xf32>, vector<1x4x240xf32> -> vector<1x4x256xf32>
    %98 = arith.select %13, %94, %97 : vector<1x4x256xi1>, vector<1x4x256xf32>
    %99 = arith.select %15, %97, %94 : vector<1x4x256xi1>, vector<1x4x256xf32>
    %100 = vector.extract_strided_slice %83 {offsets = [0, 0, 16], sizes = [1, 4, 240], strides = [1, 1, 1]} : vector<1x4x256xf32> to vector<1x4x240xf32>
    %101 = vector.extract_strided_slice %83 {offsets = [0, 0, 0], sizes = [1, 4, 16], strides = [1, 1, 1]} : vector<1x4x256xf32> to vector<1x4x16xf32>
    %102 = tpu.concatenate %100, %101 in 2 : vector<1x4x240xf32>, vector<1x4x16xf32> -> vector<1x4x256xf32>
    %103 = vector.extract_strided_slice %83 {offsets = [0, 0, 240], sizes = [1, 4, 16], strides = [1, 1, 1]} : vector<1x4x256xf32> to vector<1x4x16xf32>
    %104 = vector.extract_strided_slice %83 {offsets = [0, 0, 0], sizes = [1, 4, 240], strides = [1, 1, 1]} : vector<1x4x256xf32> to vector<1x4x240xf32>
    %105 = tpu.concatenate %103, %104 in 2 : vector<1x4x16xf32>, vector<1x4x240xf32> -> vector<1x4x256xf32>
    %106 = arith.select %13, %102, %105 : vector<1x4x256xi1>, vector<1x4x256xf32>
    %107 = arith.select %15, %105, %102 : vector<1x4x256xi1>, vector<1x4x256xf32>
    %108 = tpu.concatenate %90, %98, %106, %82, %75, %83, %91, %99, %107 in 1 : vector<1x4x256xf32>, vector<1x4x256xf32>, vector<1x4x256xf32>, vector<1x4x256xf32>, vector<1x4x256xf32>, vector<1x4x256xf32>, vector<1x4x256xf32>, vector<1x4x256xf32>, vector<1x4x256xf32> -> vector<1x36x256xf32>
    %109 = vector.shape_cast %108 : vector<1x36x256xf32> to vector<36x256xf32>
    %cst_18 = arith.constant dense<0.000000e+00> : vector<4x256xf32>
    %110 = tpu.matmul %2, %109, %cst_18 {dimension_numbers = #tpu.dot_dimension_numbers<[1], [0], [0], [1], [0, 0, 1, 1], [], []>} : vector<4x36xf32>, vector<36x256xf32>, vector<4x256xf32> -> vector<4x256xf32>
    %111 = vector.broadcast %4 : vector<4x1xf32> to vector<4x256xf32>
    %112 = arith.addf %110, %111 : vector<4x256xf32>
    %113 = vector.shape_cast %112 : vector<4x256xf32> to vector<1x4x256xf32>
    %cst_19 = arith.constant dense<0.000000e+00> : vector<1x4xf32>
    %114 = vector.multi_reduction <add>, %113, %cst_19 [2] : vector<1x4x256xf32> to vector<1x4xf32>
    %115 = vector.shape_cast %114 : vector<1x4xf32> to vector<1x4x1xf32>
    %116 = arith.mulf %113, %113 : vector<1x4x256xf32>
    %cst_20 = arith.constant dense<0.000000e+00> : vector<1x4xf32>
    %117 = vector.multi_reduction <add>, %116, %cst_20 [2] : vector<1x4x256xf32> to vector<1x4xf32>
    %118 = vector.shape_cast %117 : vector<1x4xf32> to vector<1x4x1xf32>
    %cst_21 = arith.constant 3.906250e-03 : f32
    %119 = vector.broadcast %cst_21 : f32 to vector<1x4x1xf32>
    %120 = arith.mulf %115, %119 : vector<1x4x1xf32>
    %cst_22 = arith.constant 3.906250e-03 : f32
    %121 = vector.broadcast %cst_22 : f32 to vector<1x4x1xf32>
    %122 = arith.mulf %118, %121 : vector<1x4x1xf32>
    %123 = arith.mulf %120, %120 : vector<1x4x1xf32>
    %124 = arith.subf %122, %123 : vector<1x4x1xf32>
    %cst_23 = arith.constant 0.000000e+00 : f32
    %125 = vector.broadcast %cst_23 : f32 to vector<1x4x1xf32>
    %126 = arith.maximumf %124, %125 : vector<1x4x1xf32>
    %127 = vector.broadcast %120 : vector<1x4x1xf32> to vector<1x4x256xf32>
    %128 = arith.subf %113, %127 : vector<1x4x256xf32>
    %cst_24 = arith.constant 9.99999974E-6 : f32
    %129 = vector.broadcast %cst_24 : f32 to vector<1x4x1xf32>
    %130 = arith.addf %126, %129 : vector<1x4x1xf32>
    %131 = math.rsqrt %130 : vector<1x4x1xf32>
    %132 = vector.broadcast %131 : vector<1x4x1xf32> to vector<1x4x256xf32>
    %133 = arith.mulf %128, %132 : vector<1x4x256xf32>
    %134 = arith.addf %0, %133 : vector<1x4x256xf32>
    %c0_25 = arith.constant 0 : index
    %c0_26 = arith.constant 0 : index
    %c0_27 = arith.constant 0 : index
    %135 = vector.load %arg6[%c0_25, %c0_26, %c0_27] : memref<1x4x256xf32, #tpu.memory_space<vmem>>, vector<1x4x256xf32>
    tpu.vector_store %arg6[%c0_25, %c0_26, %c0_27], %134 {strides = array<i32>} : memref<1x4x256xf32, #tpu.memory_space<vmem>>, vector<1x4x256xf32>,
    return
  }
  func.func @transform_0(%arg0: i32) -> (i32, i32, i32) {
    %c0_i32 = arith.constant 0 : i32
    %c0_i32_0 = arith.constant 0 : i32
    %c0_i32_1 = arith.constant 0 : i32
    return %arg0, %c0_i32, %c0_i32_0 : i32, i32, i32
  }
  func.func @transform_1(%arg0: i32) -> (i32, i32) {
    %c0_i32 = arith.constant 0 : i32
    %c0_i32_0 = arith.constant 0 : i32
    %c0_i32_1 = arith.constant 0 : i32
    return %c0_i32, %c0_i32_0 : i32, i32
  }
  func.func @transform_2(%arg0: i32) -> (i32, i32) {
    %c0_i32 = arith.constant 0 : i32
    %c0_i32_0 = arith.constant 0 : i32
    %c0_i32_1 = arith.constant 0 : i32
    return %c0_i32, %c0_i32_0 : i32, i32
  }
  func.func @transform_3(%arg0: i32) -> (i32, i32) {
    %c0_i32 = arith.constant 0 : i32
    %c0_i32_0 = arith.constant 0 : i32
    %c0_i32_1 = arith.constant 0 : i32
    return %c0_i32, %c0_i32_0 : i32, i32
  }
  func.func @transform_4(%arg0: i32) -> (i32, i32) {
    %c0_i32 = arith.constant 0 : i32
    %c0_i32_0 = arith.constant 0 : i32
    %c0_i32_1 = arith.constant 0 : i32
    return %c0_i32, %c0_i32_0 : i32, i32
  }
  func.func @transform_5(%arg0: i32) -> (i32, i32, i32) {
    %c0_i32 = arith.constant 0 : i32
    %c0_i32_0 = arith.constant 0 : i32
    %c0_i32_1 = arith.constant 0 : i32
    return %arg0, %c0_i32, %c0_i32_0 : i32, i32, i32
  }
}

</mosaic_0001>

<llo_original>
// kernel: tpu_custom_call.1
$region0: #{tpu_custom_call.1}
  #allocation0 [shape = 'u32[]', space=smem, size = 0x4, offset = 0x4, fixed_abs, tag = 'smem constant byte address 0x4 - core index']
  #allocation1 [shape = 'u32[144,128]{1,0:T(1,128)}', space=vmem, size = 0x12000, scoped, tag = 'internal scratch']
  %s0 = inlined_call_operand.hbm [shape: f32[2,4,256], index: 0, kind: input, shape index: {}]
  %s1 = inlined_call_operand.vmem [shape: f32[4,36], index: 1, kind: input, shape index: {}]
  %s2 = inlined_call_operand.vmem [shape: f32[4,1], index: 2, kind: input, shape index: {}]
  %s3 = inlined_call_operand.vmem [shape: f32[4,36], index: 3, kind: input, shape index: {}]
  %s4 = inlined_call_operand.vmem [shape: f32[4,1], index: 4, kind: input, shape index: {}]
  %s5 = inlined_call_operand.hbm [shape: f32[2,4,256], index: 5, kind: output, shape index: {}]
  %s6 = sld [smem:[#allocation0]]
  $region57: #{tpu_custom_call.1} parent=0
    _
  %s8 = ssub.s32 1, %s6
  %s9 = scalar_select 0, %s8, %s6
  $region1: #{tpu_custom_call.1} parent=0
    #allocation2 [shape = 'u8[8192]{0}', space=vmem, size = 0x2000, scoped, tag = 'input window, operand 0']
    #allocation3 [shape = 's32[2]{0}', space=sflag, size = 0x8, scoped, tag = 'scoped memory for tpu_custom_call.1']
    #allocation4 [shape = 's32[2]{0}', space=sflag, size = 0x8, scoped, tag = 'scoped memory for tpu_custom_call.1']
    #allocation5 [shape = 'u8[8192]{0}', space=vmem, size = 0x2000, scoped, tag = 'output window, operand 0']
    %10 = vsyncpa [#allocation3], 0
    %s11 = scalar_lea.sflag [#allocation3], 1
    %12 = vsyncpa %s11, 0
    %13 = vsyncpa [#allocation4], 0
    %s14 = scalar_lea.sflag [#allocation4], 1
    %15 = vsyncpa %s14, 0
    loop: start=0, step=1, limit=4
    $region2: #{tpu_custom_call.1} parent=1 // loop_pre_header
      _
    $region3: #{tpu_custom_call.1} parent=1 // loop_header
      %s17 = sphi 0, %s21
      %p18 = scmp.ge.s32.totalorder %s17, 4
      %s27 = sphi 0, %s29
      %s30 = sphi 0, %s27
      %s31 = sphi 0, %s30
      %s47 = sphi 0, %s31
      %s51 = sphi 0, %s51
      %s53 = sphi 0, %s51
      %s54 = sphi 0, %s53
      %s68 = sphi 0, %s54
      %s72 = sphi 0, %s72
      %s74 = sphi 0, %s72
      %s75 = sphi 0, %s74
      %s89 = sphi 0, %s75
      %s93 = sphi 0, %s93
      %s95 = sphi 0, %s93
      %s96 = sphi 0, %s95
      %s110 = sphi 0, %s96
      %s114 = sphi 0, %s114
      %s116 = sphi 0, %s114
      %s117 = sphi 0, %s116
      %s131 = sphi 0, %s117
      %s137 = sphi 0, %s139
      %s140 = sphi 0, %s137
      %s141 = sphi 0, %s140
      %s157 = sphi 0, %s141
    $region4: #{tpu_custom_call.1} parent=1 // loop_header_branch
      %20 = sbr.rel (%p18) target = $region8
    $region5: #{tpu_custom_call.1} parent=1 // loop_body
      %s22 = ssub.s32 %s17, 1
      %s23 = ssub.s32 %s17, 2
      %s24 = sadd.s32 %s17, 1
      %s25 = ssub.s32 %s17, %s24
      %p26 = scmp.eq.s32.totalorder %s25, 0
      %s28 = sadd.s32 %s27, 1
      %s29 = scalar_select %p26, %s27, %s28
      %p32 = pneg %p26
      %p33 = scmp.eq.s32.totalorder %s17, 1
      %p34 = por %p32, %p33
      %p35 = scmp.ne.s32.totalorder %s27, %s30
      %p36 = scmp.eq.s32.totalorder %s17, 0
      %p37 = por %p35, %p36
      %p38 = scmp.ne.s32.totalorder %s27, %s30
      %p39 = scmp.eq.s32.totalorder %s22, 1
      %p40 = por %p38, %p39
      %p41 = scmp.ne.s32.totalorder %s30, %s31
      %p42 = scmp.eq.s32.totalorder %s22, 0
      %p43 = por %p41, %p42
      %p44 = scmp.ne.s32.totalorder %s30, %s31
      %p45 = scmp.eq.s32.totalorder %s23, 1
      %p46 = por %p44, %p45
      %p48 = scmp.ne.s32.totalorder %s31, %s47
      %p49 = scmp.eq.s32.totalorder %s23, 0
      %p50 = por %p48, %p49
      %s52 = sadd.s32 %s51, 1
      %p55 = scmp.eq.s32.totalorder %s17, 1
      %p56 = scmp.ne.s32.totalorder %s51, %s53
      %p57 = scmp.eq.s32.totalorder %s17, 0
      %p58 = por %p56, %p57
      %p59 = scmp.ne.s32.totalorder %s51, %s53
      %p60 = scmp.eq.s32.totalorder %s22, 1
      %p61 = por %p59, %p60
      %p62 = scmp.ne.s32.totalorder %s53, %s54
      %p63 = scmp.eq.s32.totalorder %s22, 0
      %p64 = por %p62, %p63
      %p65 = scmp.ne.s32.totalorder %s53, %s54
      %p66 = scmp.eq.s32.totalorder %s23, 1
      %p67 = por %p65, %p66
      %p69 = scmp.ne.s32.totalorder %s54, %s68
      %p70 = scmp.eq.s32.totalorder %s23, 0
      %p71 = por %p69, %p70
      %s73 = sadd.s32 %s72, 1
      %p76 = scmp.eq.s32.totalorder %s17, 1
      %p77 = scmp.ne.s32.totalorder %s72, %s74
      %p78 = scmp.eq.s32.totalorder %s17, 0
      %p79 = por %p77, %p78
      %p80 = scmp.ne.s32.totalorder %s72, %s74
      %p81 = scmp.eq.s32.totalorder %s22, 1
      %p82 = por %p80, %p81
      %p83 = scmp.ne.s32.totalorder %s74, %s75
      %p84 = scmp.eq.s32.totalorder %s22, 0
      %p85 = por %p83, %p84
      %p86 = scmp.ne.s32.totalorder %s74, %s75
      %p87 = scmp.eq.s32.totalorder %s23, 1
      %p88 = por %p86, %p87
      %p90 = scmp.ne.s32.totalorder %s75, %s89
      %p91 = scmp.eq.s32.totalorder %s23, 0
      %p92 = por %p90, %p91
      %s94 = sadd.s32 %s93, 1
      %p97 = scmp.eq.s32.totalorder %s17, 1
      %p98 = scmp.ne.s32.totalorder %s93, %s95
      %p99 = scmp.eq.s32.totalorder %s17, 0
      %p100 = por %p98, %p99
      %p101 = scmp.ne.s32.totalorder %s93, %s95
      %p102 = scmp.eq.s32.totalorder %s22, 1
      %p103 = por %p101, %p102
      %p104 = scmp.ne.s32.totalorder %s95, %s96
      %p105 = scmp.eq.s32.totalorder %s22, 0
      %p106 = por %p104, %p105
      %p107 = scmp.ne.s32.totalorder %s95, %s96
      %p108 = scmp.eq.s32.totalorder %s23, 1
      %p109 = por %p107, %p108
      %p111 = scmp.ne.s32.totalorder %s96, %s110
      %p112 = scmp.eq.s32.totalorder %s23, 0
      %p113 = por %p111, %p112
      %s115 = sadd.s32 %s114, 1
      %p118 = scmp.eq.s32.totalorder %s17, 1
      %p119 = scmp.ne.s32.totalorder %s114, %s116
      %p120 = scmp.eq.s32.totalorder %s17, 0
      %p121 = por %p119, %p120
      %p122 = scmp.ne.s32.totalorder %s114, %s116
      %p123 = scmp.eq.s32.totalorder %s22, 1
      %p124 = por %p122, %p123
      %p125 = scmp.ne.s32.totalorder %s116, %s117
      %p126 = scmp.eq.s32.totalorder %s22, 0
      %p127 = por %p125, %p126
      %p128 = scmp.ne.s32.totalorder %s116, %s117
      %p129 = scmp.eq.s32.totalorder %s23, 1
      %p130 = por %p128, %p129
      %p132 = scmp.ne.s32.totalorder %s117, %s131
      %p133 = scmp.eq.s32.totalorder %s23, 0
      %p134 = por %p132, %p133
      %s135 = ssub.s32 %s17, %s24
      %p136 = scmp.eq.s32.totalorder %s135, 0
      %s138 = sadd.s32 %s137, 1
      %s139 = scalar_select %p136, %s137, %s138
      %p142 = pneg %p136
      %p143 = scmp.eq.s32.totalorder %s17, 1
      %p144 = por %p142, %p143
      %p145 = scmp.ne.s32.totalorder %s137, %s140
      %p146 = scmp.eq.s32.totalorder %s17, 0
      %p147 = por %p145, %p146
      %p148 = scmp.ne.s32.totalorder %s137, %s140
      %p149 = scmp.eq.s32.totalorder %s22, 1
      %p150 = por %p148, %p149
      %p151 = scmp.ne.s32.totalorder %s140, %s141
      %p152 = scmp.eq.s32.totalorder %s22, 0
      %p153 = por %p151, %p152
      %p154 = scmp.ne.s32.totalorder %s140, %s141
      %p155 = scmp.eq.s32.totalorder %s23, 1
      %p156 = por %p154, %p155
      %p158 = scmp.ne.s32.totalorder %s141, %s157
      %p159 = scmp.eq.s32.totalorder %s23, 0
      %p160 = por %p158, %p159
      %p161 = scmp.le.s32.totalorder 1, %s17
      %p162 = scmp.lt.s32.totalorder %s17, 3
      %p163 = pnand %p161, %p162
      %p164 = pneg %p163
      // Predicated region
      $region9: #{tpu_custom_call.1} parent=5 // pred_check
        _
      $region10: #{tpu_custom_call.1} parent=5 // pred_check_branch
        %166 = sbr.rel (%p163) target = $region12
      $region11: #{tpu_custom_call.1} parent=5 // pred_region
        %s167 = ssub.s32 %s17, 1
        // Predicated region
        $region13: #{tpu_custom_call.1} parent=11 // pred_check
          %p168 = pneg %p64
        $region14: #{tpu_custom_call.1} parent=11 // pred_check_branch
          %170 = sbr.rel (%p168) target = $region16
        $region15: #{tpu_custom_call.1} parent=11 // pred_region
          _
        $region16: #{tpu_custom_call.1} parent=11 // pred_fallthru
          _
        // Predicated region
        $region17: #{tpu_custom_call.1} parent=11 // pred_check
          %p171 = pneg %p85
        $region18: #{tpu_custom_call.1} parent=11 // pred_check_branch
          %173 = sbr.rel (%p171) target = $region20
        $region19: #{tpu_custom_call.1} parent=11 // pred_region
          _
        $region20: #{tpu_custom_call.1} parent=11 // pred_fallthru
          _
        // Predicated region
        $region21: #{tpu_custom_call.1} parent=11 // pred_check
          %p174 = pneg %p106
        $region22: #{tpu_custom_call.1} parent=11 // pred_check_branch
          %176 = sbr.rel (%p174) target = $region24
        $region23: #{tpu_custom_call.1} parent=11 // pred_region
          _
        $region24: #{tpu_custom_call.1} parent=11 // pred_fallthru
          _
        // Predicated region
        $region25: #{tpu_custom_call.1} parent=11 // pred_check
          %p177 = pneg %p127
        $region26: #{tpu_custom_call.1} parent=11 // pred_check_branch
          %179 = sbr.rel (%p177) target = $region28
        $region27: #{tpu_custom_call.1} parent=11 // pred_region
          _
        $region28: #{tpu_custom_call.1} parent=11 // pred_fallthru
          _
      $region12: #{tpu_custom_call.1} parent=5 // pred_fallthru
        _
      %p180 = scmp.lt.s32.totalorder %s17, 2
      // Predicated region
      $region29: #{tpu_custom_call.1} parent=5 // pred_check
        %p181 = pneg %p180
      $region30: #{tpu_custom_call.1} parent=5 // pred_check_branch
        %183 = sbr.rel (%p181) target = $region32
      $region31: #{tpu_custom_call.1} parent=5 // pred_region
        // Predicated region
        $region33: #{tpu_custom_call.1} parent=31 // pred_check
          %p184 = pneg %p37
        $region34: #{tpu_custom_call.1} parent=31 // pred_check_branch
          %186 = sbr.rel (%p184) target = $region36
        $region35: #{tpu_custom_call.1} parent=31 // pred_region
          %s187 = sand.u32 %s27, 1
          %s188 = scalar_lea.sflag [#allocation3], %s187
          %s189 = sand.u32 %s27, 1
          %s190 = smul.addr %s189, 8
          %s191 = scalar_lea.vmem [#allocation2], %s190
          %s193 = ssub.s32 128, 128
          %194 = vsyncadd %s188, %s193
          %s195 = smul.addr %s17, 2
          %s196 = smul.addr %s195, 64
          %s197 = scalar_lea.hbm %s0, %s196
          %s199 = sshll.u32 %s191, 4
          %s200 = int_to_ptr.vmem [resolvable:$true] %s199
          %202 = dma.hbm_to_vmem [thread:$0]  %s197, 128, %s200, %s188
        $region36: #{tpu_custom_call.1} parent=31 // pred_fallthru
          _
      $region32: #{tpu_custom_call.1} parent=5 // pred_fallthru
        _
      %p203 = scmp.le.s32.totalorder 1, %s17
      %p204 = scmp.lt.s32.totalorder %s17, 3
      %p205 = pnand %p203, %p204
      %p206 = pneg %p205
      // Predicated region
      $region37: #{tpu_custom_call.1} parent=5 // pred_check
        _
      $region38: #{tpu_custom_call.1} parent=5 // pred_check_branch
        %208 = sbr.rel (%p205) target = $region40
      $region39: #{tpu_custom_call.1} parent=5 // pred_region
        %s209 = ssub.s32 %s17, 1
        %s210 = sand.u32 %s30, 1
        %s211 = scalar_lea.sflag [#allocation3], %s210
        %s212 = sand.u32 %s30, 1
        %s213 = smul.addr %s212, 8
        %s214 = scalar_lea.vmem [#allocation2], %s213
        // Predicated region
        $region41: #{tpu_custom_call.1} parent=39 // pred_check
          %p215 = pneg %p43
        $region42: #{tpu_custom_call.1} parent=39 // pred_check_branch
          %217 = sbr.rel (%p215) target = $region44
        $region43: #{tpu_custom_call.1} parent=39 // pred_region
          %218 = dma.done %s211, 128
        $region44: #{tpu_custom_call.1} parent=39 // pred_fallthru
          _
        %s219 = sand.u32 %s30, 1
        %s220 = scalar_lea.sflag [#allocation3], %s219
        %s221 = sand.u32 %s30, 1
        %s222 = smul.addr %s221, 8
        %s223 = scalar_lea.vmem [#allocation2], %s222
        %p224 = pneg %p43
        %p225 = pneg %p40
        %p226 = pneg %p64
        %p227 = pneg %p61
        %p228 = pneg %p85
        %p229 = pneg %p82
        %p230 = pneg %p106
        %p231 = pneg %p103
        %p232 = pneg %p127
        %p233 = pneg %p124
        %p234 = pneg %p153
        %p235 = pneg %p150
        %s236 = sand.u32 %s140, 1
        %s237 = scalar_lea.sflag [#allocation4], %s236
        %s238 = sand.u32 %s140, 1
        %s239 = smul.addr %s238, 8
        %s240 = scalar_lea.vmem [#allocation5], %s239
        %v241 = vld [vmem:[%s214] sm:$0xff]
        %v242 = vld [vmem:[%s1] sm:$0xf]
        %v243 = vld [vmem:[%s3] sm:$0xf]
        %v244 = vld [vmem:[%s2] sm:$0xf]
        %v245 = vld [vmem:[%s4] sm:$0xf]
        %v246 = vlaneseq
        %v247 = vand.u32 %v246, 127
        %v248 = vadd.s32 %v247, 128
        %v249 = vand.u32 %v247, 15
        %v250 = vand.u32 %v248, 15
        %vm251 = vcmp.eq.s32.totalorder %v249, 0
        %vm252 = vcmp.eq.s32.totalorder %v250, 0
        %vm253 = vcmp.eq.s32.totalorder %v249, 15
        %vm254 = vcmp.eq.s32.totalorder %v250, 15
        %vm255 = vcmp.lt.s32.totalorder %v247, 16
        %vm256 = vcmp.lt.s32.totalorder %v248, 16
        %vm257 = vcmp.ge.s32.totalorder %v247, 240
        %vm258 = vcmp.ge.s32.totalorder %v248, 240
        %v260 = vcombine.high %v241, %v241
        %261 = vrot.lane.b32.xlu0 %v241, 127
        %v262 = vpop.permute.xlu0 %261
        %263 = vrot.lane.b32.xlu0 %v260, 127
        %v264 = vpop.permute.xlu0 %263
        %vm265 = vcmask 1039360
        %v266 = vsel %vm265, %v262, %v264
        %v270 = vsel %vm265, %v264, %v262
        %271 = vrot.lane.b32.xlu0 %v260, 1
        %v272 = vpop.permute.xlu0 %271
        %274 = vrot.lane.b32.xlu0 %v241, 1
        %v275 = vpop.permute.xlu0 %274
        %vm276 = vcmask 7168
        %v277 = vsel %vm276, %v275, %v272
        %v280 = vsel %vm276, %v272, %v275
        %v281 = vsel %vm251, %v266, %v280
        %v282 = vsel %vm252, %v270, %v277
        %v283 = vsel %vm253, %v280, %v266
        %v284 = vsel %vm254, %v277, %v270
        %287 = vrot.lane.b32.xlu0 %v281, 112
        %v288 = vpop.permute.xlu0 %287
        %289 = vrot.lane.b32.xlu0 %v282, 112
        %v290 = vpop.permute.xlu0 %289
        %vm291 = vcmask 916480
        %v292 = vsel %vm291, %v288, %v290
        %v296 = vsel %vm291, %v290, %v288
        %297 = vrot.lane.b32.xlu0 %v282, 16
        %v298 = vpop.permute.xlu0 %297
        %300 = vrot.lane.b32.xlu0 %v281, 16
        %v301 = vpop.permute.xlu0 %300
        %vm302 = vcmask 130048
        %v303 = vsel %vm302, %v301, %v298
        %v306 = vsel %vm302, %v298, %v301
        %v307 = vsel %vm255, %v292, %v306
        %v308 = vsel %vm256, %v296, %v303
        %v309 = vsel %vm257, %v306, %v292
        %v310 = vsel %vm258, %v303, %v296
        %311 = vrot.lane.b32.xlu0 %v241, 112
        %v312 = vpop.permute.xlu0 %311
        %313 = vrot.lane.b32.xlu0 %v260, 112
        %v314 = vpop.permute.xlu0 %313
        %v315 = vsel %vm291, %v312, %v314
        %v319 = vsel %vm291, %v314, %v312
        %320 = vrot.lane.b32.xlu0 %v260, 16
        %v321 = vpop.permute.xlu0 %320
        %323 = vrot.lane.b32.xlu0 %v241, 16
        %v324 = vpop.permute.xlu0 %323
        %v325 = vsel %vm302, %v324, %v321
        %v328 = vsel %vm302, %v321, %v324
        %v329 = vsel %vm255, %v315, %v328
        %v330 = vsel %vm256, %v319, %v325
        %v331 = vsel %vm257, %v328, %v315
        %v332 = vsel %vm258, %v325, %v319
        %335 = vrot.lane.b32.xlu0 %v283, 112
        %v336 = vpop.permute.xlu0 %335
        %337 = vrot.lane.b32.xlu0 %v284, 112
        %v338 = vpop.permute.xlu0 %337
        %v339 = vsel %vm291, %v336, %v338
        %v343 = vsel %vm291, %v338, %v336
        %344 = vrot.lane.b32.xlu0 %v284, 16
        %v345 = vpop.permute.xlu0 %344
        %347 = vrot.lane.b32.xlu0 %v283, 16
        %v348 = vpop.permute.xlu0 %347
        %v349 = vsel %vm302, %v348, %v345
        %v352 = vsel %vm302, %v345, %v348
        %v353 = vsel %vm255, %v339, %v352
        %v354 = vsel %vm256, %v343, %v349
        %v355 = vsel %vm257, %v352, %v339
        %v356 = vsel %vm258, %v349, %v343
        %v359 = vrot.slane %v329, 4
        %v360 = vrot.slane %v330, 4
        %v363 = vrot.slane %v281, 4
        %v364 = vrot.slane %v282, 4
        %v368 = vrot.slane %v283, 4
        %v369 = vrot.slane %v284, 4
        %v374 = vrot.slane %v331, 4
        %v375 = vrot.slane %v332, 4
        %vm378 = vcmask 1043456
        %v379 = vsel %vm378, %v307, %v359
        %v380 = vsel %vm378, %v308, %v360
        %v381 = vsel %vm378, %v353, %v363
        %v382 = vsel %vm378, %v354, %v364
        %v383 = vsel %vm378, %v241, %v368
        %v384 = vsel %vm378, %v260, %v369
        %v385 = vsel %vm378, %v309, %v374
        %v386 = vsel %vm378, %v310, %v375
        %388 = vset.pattern.permute.xlu0 0
        %389 = vperm.xlu0 %388, %v244
        %v390 = vpop.permute.xlu0 %389
        %vm392 = vcmask 293888
        %v394 = vsel %vm392, %v242, 0
        %v397 = vsel %vm378, %v355, 0
        %v400 = vsel %vm378, %v356, 0
        %402 = vmatprep.subr.mxu0 %v380
        %403 = vmatpush1.msra.mxu0 %v379
        %404 = vmatprep.subr.mxu0 %v382
        %405 = vmatpush1.msra.mxu0 %v381
        %406 = vmatprep.subr.mxu0 %v384
        %407 = vmatpush1.msra.mxu0 %v383
        %408 = vmatprep.subr.mxu0 %v386
        %409 = vmatpush1.msra.mxu0 %v385
        %410 = vmatprep.subr.mxu0 %v400
        %411 = vmatpush1.msra.mxu0 %v397
        %412 = vmatprep.subr.mxu0 0.0
        %413 = vmatpush1.msra.mxu0 0.0
        %414 = vmatprep.subr.mxu0 0.0
        %415 = vmatpush1.msra.mxu0 0.0
        %416 = vmatprep.subr.mxu0 0.0
        %417 = vmatpush1.msra.mxu0 0.0
        %418 = vmatprep.subr.mxu0 0.0
        %419 = vmatpush1.msra.mxu0 0.0
        %420 = vmatprep.subr.mxu0 0.0
        %421 = vmatpush1.msra.mxu0 0.0
        %422 = vmatprep.subr.mxu0 0.0
        %423 = vmatpush1.msra.mxu0 0.0
        %424 = vmatprep.subr.mxu0 0.0
        %425 = vmatpush1.msra.mxu0 0.0
        %426 = vmatprep.subr.mxu0 0.0
        %427 = vmatpush1.msra.mxu0 0.0
        %428 = vmatprep.subr.mxu0 0.0
        %429 = vmatpush1.msra.mxu0 0.0
        %430 = vmatprep.subr.mxu0 0.0
        %431 = vmatpush1.msra.mxu0 0.0
        %432 = vmatprep.subr.mxu0 0.0
        %433 = vmatpush1.msra.mxu0 0.0
        %434 = vmatprep.subr.mxu0 0.0
        %435 = vmatpush1.msra.mxu0 0.0
        %436 = vmatprep.subr.mxu0 0.0
        %437 = vmatpush1.msra.mxu0 0.0
        %438 = vmatprep.subr.mxu0 0.0
        %439 = vmatpush1.msra.mxu0 0.0
        %440 = vmatprep.subr.mxu0 0.0
        %441 = vmatpush1.msra.mxu0 0.0
        %442 = vmatprep.subr.mxu0 0.0
        %443 = vmatpush1.msra.mxu0 0.0
        %444 = vmatprep.subr.mxu0 0.0
        %445 = vmatpush1.msra.mxu0 0.0
        %446 = vmatprep.subr.mxu0 0.0
        %447 = vmatpush1.msra.mxu0 0.0
        %448 = vmatprep.subr.mxu0 0.0
        %449 = vmatpush1.msra.mxu0 0.0
        %450 = vmatprep.subr.mxu0 0.0
        %451 = vmatpush1.msra.mxu0 0.0
        %452 = vmatprep.subr.mxu0 0.0
        %453 = vmatpush1.msra.mxu0 0.0
        %454 = vmatprep.subr.mxu0 0.0
        %455 = vmatpush1.msra.mxu0 0.0
        %456 = vmatprep.subr.mxu0 0.0
        %457 = vmatpush1.msra.mxu0 0.0
        %458 = vmatprep.subr.mxu0 0.0
        %459 = vmatpush1.msra.mxu0 0.0
        %460 = vmatprep.subr.mxu0 0.0
        %461 = vmatpush1.msra.mxu0 0.0
        %462 = vmatprep.subr.mxu0 0.0
        %463 = vmatpush1.msra.mxu0 0.0
        %464 = vmatprep.subr.mxu0 0.0
        %465 = vmatpush1.msra.mxu0 0.0
        %466 = vmatprep.mubr.f32.mxu0 0.0
        %467 = vmatmul.mubr.f32.gmra.mrb[0].mxu0 %v394
        %v468 = vpop.f32.mrb[0].mxu0
        %v469 = vadd.f32 %v390, %v468
        %v470 = vpop.f32.mrb[0].mxu0
        %v471 = vadd.f32 %v390, %v470
        %472 = vdwg.mxu0
        %v473 = vsel %vm378, %v469, 0.0
        %v474 = vsel %vm378, %v471, 0.0
        %v475 = vadd.f32 %v473, %v474
        %476 = vadd.xlane.f32.xlu0 %v475
        %v477 = vpop.xlane.xlu0 %476
        %v478 = vmul.f32 %v469, %v469
        %v479 = vmul.f32 %v471, %v471
        %v480 = vsel %vm378, %v478, 0.0
        %v481 = vsel %vm378, %v479, 0.0
        %v482 = vadd.f32 %v480, %v481
        %483 = vadd.xlane.f32.xlu0 %v482
        %v484 = vpop.xlane.xlu0 %483
        %v485 = vmul.f32 %v477, 0.00390625
        %v486 = vmul.f32 %v484, 0.00390625
        %v487 = vmul.f32 %v485, %v485
        %v488 = vsub.f32 %v486, %v487
        %v489 = vmax.f32 %v488, 0.0
        %v490 = vsub.f32 %v469, %v485
        %v491 = vsub.f32 %v471, %v485
        %v492 = vadd.f32 %v489, 1e-05
        %v493 = vrsqrt.pop %v492
        %v494 = vmul.f32 %v490, %v493
        %v495 = vmul.f32 %v491, %v493
        %v496 = vmax.f32 %v494, 0.0
        %v497 = vmax.f32 %v495, 0.0
        %500 = vrot.lane.b32.xlu0 %v496, 127
        %v501 = vpop.permute.xlu0 %500
        %502 = vrot.lane.b32.xlu0 %v497, 127
        %v503 = vpop.permute.xlu0 %502
        %v504 = vsel %vm265, %v501, %v503
        %v508 = vsel %vm265, %v503, %v501
        %509 = vrot.lane.b32.xlu0 %v497, 1
        %v510 = vpop.permute.xlu0 %509
        %512 = vrot.lane.b32.xlu0 %v496, 1
        %v513 = vpop.permute.xlu0 %512
        %v514 = vsel %vm276, %v513, %v510
        %v517 = vsel %vm276, %v510, %v513
        %v518 = vsel %vm251, %v504, %v517
        %v519 = vsel %vm252, %v508, %v514
        %v520 = vsel %vm253, %v517, %v504
        %v521 = vsel %vm254, %v514, %v508
        %524 = vrot.lane.b32.xlu0 %v518, 112
        %v525 = vpop.permute.xlu0 %524
        %526 = vrot.lane.b32.xlu0 %v519, 112
        %v527 = vpop.permute.xlu0 %526
        %v528 = vsel %vm291, %v525, %v527
        %v532 = vsel %vm291, %v527, %v525
        %533 = vrot.lane.b32.xlu0 %v519, 16
        %v534 = vpop.permute.xlu0 %533
        %536 = vrot.lane.b32.xlu0 %v518, 16
        %v537 = vpop.permute.xlu0 %536
        %v538 = vsel %vm302, %v537, %v534
        %v541 = vsel %vm302, %v534, %v537
        %v542 = vsel %vm255, %v528, %v541
        %v543 = vsel %vm256, %v532, %v538
        %v544 = vsel %vm257, %v541, %v528
        %v545 = vsel %vm258, %v538, %v532
        %546 = vrot.lane.b32.xlu0 %v496, 112
        %v547 = vpop.permute.xlu0 %546
        %548 = vrot.lane.b32.xlu0 %v497, 112
        %v549 = vpop.permute.xlu0 %548
        %v550 = vsel %vm291, %v547, %v549
        %v554 = vsel %vm291, %v549, %v547
        %555 = vrot.lane.b32.xlu0 %v497, 16
        %v556 = vpop.permute.xlu0 %555
        %558 = vrot.lane.b32.xlu0 %v496, 16
        %v559 = vpop.permute.xlu0 %558
        %v560 = vsel %vm302, %v559, %v556
        %v563 = vsel %vm302, %v556, %v559
        %v564 = vsel %vm255, %v550, %v563
        %v565 = vsel %vm256, %v554, %v560
        %v566 = vsel %vm257, %v563, %v550
        %v567 = vsel %vm258, %v560, %v554
        %570 = vrot.lane.b32.xlu0 %v520, 112
        %v571 = vpop.permute.xlu0 %570
        %572 = vrot.lane.b32.xlu0 %v521, 112
        %v573 = vpop.permute.xlu0 %572
        %v574 = vsel %vm291, %v571, %v573
        %v578 = vsel %vm291, %v573, %v571
        %579 = vrot.lane.b32.xlu0 %v521, 16
        %v580 = vpop.permute.xlu0 %579
        %582 = vrot.lane.b32.xlu0 %v520, 16
        %v583 = vpop.permute.xlu0 %582
        %v584 = vsel %vm302, %v583, %v580
        %v587 = vsel %vm302, %v580, %v583
        %v588 = vsel %vm255, %v574, %v587
        %v589 = vsel %vm256, %v578, %v584
        %v590 = vsel %vm257, %v587, %v574
        %v591 = vsel %vm258, %v584, %v578
        %v594 = vrot.slane %v564, 4
        %v595 = vrot.slane %v565, 4
        %v598 = vrot.slane %v518, 4
        %v599 = vrot.slane %v519, 4
        %v602 = vrot.slane %v520, 4
        %v603 = vrot.slane %v521, 4
        %v608 = vrot.slane %v566, 4
        %v609 = vrot.slane %v567, 4
        %v612 = vsel %vm378, %v542, %v594
        %v613 = vsel %vm378, %v543, %v595
        %v614 = vsel %vm378, %v588, %v598
        %v615 = vsel %vm378, %v589, %v599
        %v616 = vsel %vm378, %v496, %v602
        %v617 = vsel %vm378, %v497, %v603
        %v618 = vsel %vm378, %v544, %v608
        %v619 = vsel %vm378, %v545, %v609
        %621 = vset.pattern.permute.xlu0 0
        %622 = vperm.xlu0 %621, %v245
        %v623 = vpop.permute.xlu0 %622
        %v626 = vsel %vm392, %v243, 0
        %v629 = vsel %vm378, %v590, 0
        %v632 = vsel %vm378, %v591, 0
        %634 = vmatprep.subr.mxu0 %v613
        %635 = vmatpush1.msra.mxu0 %v612
        %636 = vmatprep.subr.mxu0 %v615
        %637 = vmatpush1.msra.mxu0 %v614
        %638 = vmatprep.subr.mxu0 %v617
        %639 = vmatpush1.msra.mxu0 %v616
        %640 = vmatprep.subr.mxu0 %v619
        %641 = vmatpush1.msra.mxu0 %v618
        %642 = vmatprep.subr.mxu0 %v632
        %643 = vmatpush1.msra.mxu0 %v629
        %644 = vmatprep.subr.mxu0 0.0
        %645 = vmatpush1.msra.mxu0 0.0
        %646 = vmatprep.subr.mxu0 0.0
        %647 = vmatpush1.msra.mxu0 0.0
        %648 = vmatprep.subr.mxu0 0.0
        %649 = vmatpush1.msra.mxu0 0.0
        %650 = vmatprep.subr.mxu0 0.0
        %651 = vmatpush1.msra.mxu0 0.0
        %652 = vmatprep.subr.mxu0 0.0
        %653 = vmatpush1.msra.mxu0 0.0
        %654 = vmatprep.subr.mxu0 0.0
        %655 = vmatpush1.msra.mxu0 0.0
        %656 = vmatprep.subr.mxu0 0.0
        %657 = vmatpush1.msra.mxu0 0.0
        %658 = vmatprep.subr.mxu0 0.0
        %659 = vmatpush1.msra.mxu0 0.0
        %660 = vmatprep.subr.mxu0 0.0
        %661 = vmatpush1.msra.mxu0 0.0
        %662 = vmatprep.subr.mxu0 0.0
        %663 = vmatpush1.msra.mxu0 0.0
        %664 = vmatprep.subr.mxu0 0.0
        %665 = vmatpush1.msra.mxu0 0.0
        %666 = vmatprep.subr.mxu0 0.0
        %667 = vmatpush1.msra.mxu0 0.0
        %668 = vmatprep.subr.mxu0 0.0
        %669 = vmatpush1.msra.mxu0 0.0
        %670 = vmatprep.subr.mxu0 0.0
        %671 = vmatpush1.msra.mxu0 0.0
        %672 = vmatprep.subr.mxu0 0.0
        %673 = vmatpush1.msra.mxu0 0.0
        %674 = vmatprep.subr.mxu0 0.0
        %675 = vmatpush1.msra.mxu0 0.0
        %676 = vmatprep.subr.mxu0 0.0
        %677 = vmatpush1.msra.mxu0 0.0
        %678 = vmatprep.subr.mxu0 0.0
        %679 = vmatpush1.msra.mxu0 0.0
        %680 = vmatprep.subr.mxu0 0.0
        %681 = vmatpush1.msra.mxu0 0.0
        %682 = vmatprep.subr.mxu0 0.0
        %683 = vmatpush1.msra.mxu0 0.0
        %684 = vmatprep.subr.mxu0 0.0
        %685 = vmatpush1.msra.mxu0 0.0
        %686 = vmatprep.subr.mxu0 0.0
        %687 = vmatpush1.msra.mxu0 0.0
        %688 = vmatprep.subr.mxu0 0.0
        %689 = vmatpush1.msra.mxu0 0.0
        %690 = vmatprep.subr.mxu0 0.0
        %691 = vmatpush1.msra.mxu0 0.0
        %692 = vmatprep.subr.mxu0 0.0
        %693 = vmatpush1.msra.mxu0 0.0
        %694 = vmatprep.subr.mxu0 0.0
        %695 = vmatpush1.msra.mxu0 0.0
        %696 = vmatprep.subr.mxu0 0.0
        %697 = vmatpush1.msra.mxu0 0.0
        %698 = vmatprep.mubr.f32.mxu0 0.0
        %699 = vmatmul.mubr.f32.gmra.mrb[0].mxu0 %v626
        %v700 = vpop.f32.mrb[0].mxu0
        %v701 = vadd.f32 %v623, %v700
        %v702 = vpop.f32.mrb[0].mxu0
        %v703 = vadd.f32 %v623, %v702
        %704 = vdwg.mxu0
        %v705 = vsel %vm378, %v701, 0.0
        %v706 = vsel %vm378, %v703, 0.0
        %v707 = vadd.f32 %v705, %v706
        %708 = vadd.xlane.f32.xlu0 %v707
        %v709 = vpop.xlane.xlu0 %708
        %v710 = vmul.f32 %v701, %v701
        %v711 = vmul.f32 %v703, %v703
        %v712 = vsel %vm378, %v710, 0.0
        %v713 = vsel %vm378, %v711, 0.0
        %v714 = vadd.f32 %v712, %v713
        %715 = vadd.xlane.f32.xlu0 %v714
        %v716 = vpop.xlane.xlu0 %715
        %v717 = vmul.f32 %v709, 0.00390625
        %v718 = vmul.f32 %v716, 0.00390625
        %v719 = vmul.f32 %v717, %v717
        %v720 = vsub.f32 %v718, %v719
        %v721 = vmax.f32 %v720, 0.0
        %v722 = vsub.f32 %v701, %v717
        %v723 = vsub.f32 %v703, %v717
        %v724 = vadd.f32 %v721, 1e-05
        %v725 = vrsqrt.pop %v724
        %v726 = vmul.f32 %v722, %v725
        %v727 = vmul.f32 %v723, %v725
        %v730 = vcombine.low %v726, %v727
        %v732 = vadd.f32 %v241, %v730
        %733 = vst [vmem:[%s240] sm:$0xff] %v732
        %s734 = sand.u32 %s140, 1
        %s735 = scalar_lea.sflag [#allocation4], %s734
        %s736 = sand.u32 %s140, 1
        %s737 = smul.addr %s736, 8
        %s738 = scalar_lea.vmem [#allocation5], %s737
        // Predicated region
        $region45: #{tpu_custom_call.1} parent=39 // pred_check
          %p739 = pneg %p150
        $region46: #{tpu_custom_call.1} parent=39 // pred_check_branch
          %741 = sbr.rel (%p739) target = $region48
        $region47: #{tpu_custom_call.1} parent=39 // pred_region
          %s743 = ssub.s32 128, 128
          %744 = vsyncadd %s735, %s743
          %s745 = smul.addr %s22, 2
          %s746 = smul.addr %s745, 64
          %s747 = scalar_lea.hbm %s5, %s746
          %s749 = sshll.u32 %s738, 4
          %s750 = int_to_ptr.vmem [resolvable:$true] %s749
          %752 = dma.vmem_to_hbm [thread:$0]  %s750, 128, %s747, %s735
        $region48: #{tpu_custom_call.1} parent=39 // pred_fallthru
          _
      $region40: #{tpu_custom_call.1} parent=5 // pred_fallthru
        _
      %p753 = scmp.le.s32.totalorder 2, %s17
      // Predicated region
      $region49: #{tpu_custom_call.1} parent=5 // pred_check
        %p754 = pneg %p753
      $region50: #{tpu_custom_call.1} parent=5 // pred_check_branch
        %756 = sbr.rel (%p754) target = $region52
      $region51: #{tpu_custom_call.1} parent=5 // pred_region
        %s757 = ssub.s32 %s17, 2
        // Predicated region
        $region53: #{tpu_custom_call.1} parent=51 // pred_check
          %p758 = pneg %p156
        $region54: #{tpu_custom_call.1} parent=51 // pred_check_branch
          %760 = sbr.rel (%p758) target = $region56
        $region55: #{tpu_custom_call.1} parent=51 // pred_region
          %s761 = sand.u32 %s141, 1
          %s762 = scalar_lea.sflag [#allocation4], %s761
          %s763 = sand.u32 %s141, 1
          %s764 = smul.addr %s763, 8
          %s765 = scalar_lea.vmem [#allocation5], %s764
          %766 = dma.done %s762, 128
        $region56: #{tpu_custom_call.1} parent=51 // pred_fallthru
          _
      $region52: #{tpu_custom_call.1} parent=5 // pred_fallthru
        _
    $region6: #{tpu_custom_call.1} parent=1 // loop_footer
      %s21 = sadd.s32 1, %s17
    $region7: #{tpu_custom_call.1} parent=1 // loop_footer_branch
      %16 = sbr.rel target = $region3
    $region8: #{tpu_custom_call.1} parent=1 // loop_exit
      _
    %767 = vsyncpa [#allocation3], 1
    %s768 = scalar_lea.sflag [#allocation3], 1
    %769 = vsyncpa %s768, 1
    %770 = vsyncpa [#allocation4], 1
    %s771 = scalar_lea.sflag [#allocation4], 1
    %772 = vsyncpa %s771, 1

</llo_original>
